<compile_context>
chip_gen: v5e
topology: v5e:2x2
jax: 0.10.0
libtpu: 0.0.40
codegen_flags: <defaults>
</compile_context>

<pallas_src>
import jax
import jax.numpy as jnp
from jax import lax
from jax.experimental import pallas as pl
from jax.experimental.pallas import tpu as pltpu

KERNEL_SIZE = 7
PAD = KERNEL_SIZE // 2          # 3
LANE = 128
GUARD = 128                     # zeroed guard strips in the VMEM conv slab (>= PAD)
HALF_HALO = 64                  # halo per side for the L-tiled path (window = TL + 128)
MB = 1024 * 1024


def _round_up(x, m):
    return ((x + m - 1) // m) * m


def _cdiv(a, b):
    return -(-a // b)


def _vmem_plan():
    """(vmem_limit_bytes, block_budget_bytes) derived from the chip's VMEM size."""
    try:
        cap = int(pltpu.get_tpu_info().vmem_capacity_bytes)
    except Exception:
        cap = 128 * MB
    # 48 MiB limit on v7x (64 MiB physical), 96 MiB on v5e/v6e (128 MiB physical).
    limit = max(32 * MB, min(cap - 16 * MB, (cap * 3) // 4))
    budget = max(16 * MB, limit - 8 * MB)      # headroom for compiler scratch
    return limit, budget


def _tile_cases(length, tl):
    """Static (store_offset, store_width) cases for an L-tiling with clamped windows."""
    tw = tl + 2 * HALF_HALO
    n_l = _cdiv(length, tl)
    cases, seen = [], set()
    for j in range(n_l):
        start = min(max(j * tl - HALF_HALO, 0), length - tw)   # same formula as in-kernel
        off = j * tl - start
        width = min(tl, length - j * tl)
        if (off, width) not in seen:
            seen.add((off, width))
            cases.append((off, width))
    # `off` alone identifies a case (widths differ only for the last tile, whose
    # offset is provably distinct); the kernel branches on it.
    assert len({o for o, _ in cases}) == len(cases)
    return n_l, tw, cases


def _plan(batch, channels, length, itemsize, budget):
    """Choose batch block (tb), lane tile (tl), window (tw), store cases and grid."""
    cp = _round_up(channels, 8)
    lp = _round_up(length, LANE)

    def need_full(tb):          # full-L blocks, tb batch rows per grid step
        io = tb * cp * lp * itemsize                     # one in OR out buffer
        temps = 2 * tb * cp * lp * 4                     # f32 upcast + product
        slab = 2 * _round_up(tb, 8) * (lp + 2 * GUARD) * 4
        return 4 * io + temps + slab                     # in+out, double buffered

    # Largest lane tile (multiple of 128) whose halo'd window fits the budget.
    tl2 = None
    for tl in (32768, 16384, 8192, 4096, 2048, 1024, 512, 256, 128):
        tw = tl + 2 * HALF_HALO
        if tw > length:
            continue
        need = (2 * (cp * tw + cp * tl) * itemsize + 2 * cp * tw * 4
                + 2 * 8 * (tw + 2 * GUARD) * 4)
        if need <= budget:
            tl2 = tl
            break

    path1_ok = need_full(1) <= budget
    # Prefer one full-L block per step unless (a) it does not fit or (b) B == 1 and
    # L is large enough that splitting L keeps both v7x TensorCores busy.
    split_for_megacore = (batch == 1 and length >= 4096 and tl2 is not None
                          and _cdiv(length, tl2) >= 2)
    if path1_ok and not split_for_megacore:
        tb = 1
        while tb < batch and need_full(tb + 1) <= budget:
            tb += 1
        if batch >= 2:
            tb = min(tb, _cdiv(batch, 2))        # keep >= 2 grid steps (v7x megacore)
        return dict(tb=tb, tl=length, tw=length, cases=[(0, length)],
                    grid=(_cdiv(batch, tb), 1))

    if tl2 is None:
        if 128 + 2 * HALF_HALO <= length:
            tl2 = 128                            # over budget but smallest halo'd tile
        else:
            # L too short to tile with a halo; fall back to one full-L block.
            return dict(tb=1, tl=length, tw=length, cases=[(0, length)],
                        grid=(batch, 1))

    n_l, tw, cases = _tile_cases(length, tl2)
    return dict(tb=1, tl=tl2, tw=tw, cases=cases, grid=(batch, n_l))


def _make_kernel(tb, channels, tw, tl, length, cases):
    inv_c = 1.0 / float(channels)
    multi = len(cases) > 1

    def kernel(x_ref, w_ref, b_ref, o_ref, slab_ref):
        # x_ref : (tb, C, tw) VMEM        w_ref: (2, 7) SMEM     b_ref: (1,) SMEM
        # o_ref : (tb, C, tl) VMEM        slab_ref: (2, tb, tw + 2*GUARD) VMEM f32
        xf = x_ref[...].astype(jnp.float32)                     # (tb, C, tw)

        # Channel max / mean for every column of the window.
        mx = jnp.max(xf, axis=1)                                # (tb, tw)
        av = jnp.sum(xf, axis=1) * inv_c                        # (tb, tw)

        # Slab with zeroed guard strips: supplies the conv's zero padding.  The
        # index_map clamps windows so a window edge coincides with an array edge
        # exactly when the zeros are semantically correct; interior tiles never
        # read the guard (they read real halo data inside the window).
        zeros = jnp.zeros((tb, GUARD), jnp.float32)
        slab_ref[0, :, 0:GUARD] = zeros
        slab_ref[1, :, 0:GUARD] = zeros
        slab_ref[0, :, GUARD + tw:GUARD + tw + GUARD] = zeros
        slab_ref[1, :, GUARD + tw:GUARD + tw + GUARD] = zeros
        slab_ref[0, :, GUARD:GUARD + tw] = mx
        slab_ref[1, :, GUARD:GUARD + tw] = av

        # 7-tap "same" conv over the whole window: one shifted slice pair per tap.
        acc = jnp.full((tb, tw), b_ref[0], dtype=jnp.float32)
        for k in range(KERNEL_SIZE):
            o = GUARD + k - PAD
            acc = acc + (w_ref[0, k] * slab_ref[0, :, o:o + tw]
                         + w_ref[1, k] * slab_ref[1, :, o:o + tw])
        attn = jax.nn.sigmoid(acc)                              # (tb, tw)

        def store(off, width):
            xa = xf[:, :, off:off + width]                      # (tb, C, width)
            at = attn[:, off:off + width][:, None, :]           # (tb, 1, width)
            o_ref[:, :, 0:width] = (xa * at).astype(o_ref.dtype)

        if not multi:
            off0, width0 = cases[0]
            store(off0, width0)
        else:
            j = pl.program_id(1)
            start = jnp.minimum(jnp.maximum(j * tl - HALF_HALO, 0), length - tw)
            off_dyn = j * tl - start                            # matches index_map clamp
            for off, width in cases:
                @pl.when(off_dyn == off)
                def _(off=off, width=width):
                    store(off, width)

    return kernel


def spatial_attention(x, conv_w, conv_b, *, tile_l=None):
    """x: (B, C, L) f32/bf16; conv_w: (2, 7); conv_b: (1,).  Returns (B, C, L), x.dtype."""
    batch, channels, length = x.shape
    conv_w = jnp.asarray(conv_w, jnp.float32).reshape(2, KERNEL_SIZE)
    conv_b = jnp.asarray(conv_b, jnp.float32).reshape(1)
    limit, budget = _vmem_plan()

    if (tile_l is not None and tile_l % LANE == 0 and tile_l < length
            and tile_l + 2 * HALF_HALO <= length):
        n_l, tw, cases = _tile_cases(length, tile_l)
        plan = dict(tb=1, tl=tile_l, tw=tw, cases=cases, grid=(batch, n_l))
    else:
        plan = _plan(batch, channels, length, x.dtype.itemsize, budget)

    tb, tl, tw = plan["tb"], plan["tl"], plan["tw"]
    cases, grid = plan["cases"], plan["grid"]

    if grid[1] == 1:
        # Single full-L window per step, possibly several batch rows per block.
        x_spec = pl.BlockSpec((tb, channels, length), lambda b, j: (b, 0, 0))
        o_spec = pl.BlockSpec((tb, channels, length), lambda b, j: (b, 0, 0))
    else:
        # Overlapping halo windows; element offset clamped so the window is always
        # fully in-bounds (the kernel compensates with the matching offset).
        def x_index(b, j):
            start = jnp.minimum(jnp.maximum(j * tl - HALF_HALO, 0), length - tw)
            return (b, 0, start)
        x_spec = pl.BlockSpec((1, channels, pl.Element(tw)), x_index)
        o_spec = pl.BlockSpec((1, channels, tl), lambda b, j: (b, 0, j))

    kernel = _make_kernel(tb, channels, tw, tl, length, cases)
    return pl.pallas_call(
        kernel,
        out_shape=jax.ShapeDtypeStruct((batch, channels, length), x.dtype),
        grid=grid,
        in_specs=[
            x_spec,
            pl.BlockSpec(memory_space=pltpu.MemorySpace.SMEM),
            pl.BlockSpec(memory_space=pltpu.MemorySpace.SMEM),
        ],
        out_specs=o_spec,
        scratch_shapes=[pltpu.VMEM((2, tb, tw + 2 * GUARD), jnp.float32)],
        compiler_params=pltpu.CompilerParams(
            dimension_semantics=("parallel", "parallel"),
            vmem_limit_bytes=limit,
        ),
    )(x, conv_w, conv_b)


def reference(x, conv_w, conv_b):
    """Pure-JAX reference matching the PyTorch forward (cat([max, avg]) order)."""
    mx = jnp.max(x, axis=1, keepdims=True)
    av = jnp.mean(x, axis=1, keepdims=True)
    concat = jnp.concatenate([mx, av], axis=1)          # (B, 2, L)
    attn = lax.conv_general_dilated(
        concat, conv_w[None, :, :],                     # (1, 2, 7)
        window_strides=(1,), padding=[(PAD, PAD)],
        dimension_numbers=("NCH", "OIH", "NCH"),
    ) + conv_b[None, :, None]
    return x * jax.nn.sigmoid(attn)


if __name__ == "__main__":
    key = jax.random.PRNGKey(0)
    kx, kw, kb, k2, k3, k4, k5 = jax.random.split(key, 7)

    # Deterministic Conv1d(2, 1, kernel_size=7) parameters (PyTorch-style uniform init).
    fan_in = 2 * KERNEL_SIZE
    bound = 1.0 / (fan_in ** 0.5)
    conv_w = jax.random.uniform(kw, (2, KERNEL_SIZE), jnp.float32, -bound, bound)
    conv_b = jax.random.uniform(kb, (1,), jnp.float32, -bound, bound)

    # 1) Small shape consistent with the module (batch=2, channels=4, length=16).
    x = jax.random.normal(kx, (2, 4, 16), dtype=jnp.float32)
    out = jax.block_until_ready(spatial_attention(x, conv_w, conv_b))
    ref = reference(x, conv_w, conv_b)
    assert out.shape == ref.shape
    assert jnp.allclose(out, ref, atol=1e-5, rtol=1e-5)

    # 2) Multi-tile path: ragged last tile + both boundary clamps (L=288, TL=128).
    x2 = jax.random.normal(k2, (2, 16, 288), dtype=jnp.float32)
    out2 = jax.block_until_ready(spatial_attention(x2, conv_w, conv_b, tile_l=128))
    assert jnp.allclose(out2, reference(x2, conv_w, conv_b), atol=1e-5, rtol=1e-5)

    # 3) Multi-tile path: interior (unclamped) tiles + exactly divisible L.
    x3 = jax.random.normal(k3, (1, 8, 640), dtype=jnp.float32)
    out3 = jax.block_until_ready(spatial_attention(x3, conv_w, conv_b, tile_l=128))
    assert jnp.allclose(out3, reference(x3, conv_w, conv_b), atol=1e-5, rtol=1e-5)

    # 4) bf16 I/O (in-kernel compute stays f32).
    x4 = jax.random.normal(k4, (2, 4, 64), dtype=jnp.float32).astype(jnp.bfloat16)
    out4 = jax.block_until_ready(spatial_attention(x4, conv_w, conv_b))
    assert out4.dtype == jnp.bfloat16
    ref4 = reference(x4.astype(jnp.float32), conv_w, conv_b)
    assert jnp.allclose(out4.astype(jnp.float32), ref4, atol=5e-2, rtol=5e-2)

    # 5) Batch blocking (several batch rows per grid step).
    x5 = jax.random.normal(k5, (8, 4, 64), dtype=jnp.float32)
    out5 = jax.block_until_ready(spatial_attention(x5, conv_w, conv_b))
    assert jnp.allclose(out5, reference(x5, conv_w, conv_b), atol=1e-5, rtol=1e-5)

    print("KERNEL_OK")
</pallas_src>

<mosaic_0001>
module attributes {stable_mosaic.version = 11 : i64} {
  func.func @kernel(%arg0: i32, %arg1: i32, %arg2: memref<1x4x16xf32, #tpu.memory_space<vmem>>, %arg3: memref<2x7xf32, #tpu.memory_space<smem>>, %arg4: memref<1xf32, #tpu.memory_space<smem>>, %arg5: memref<1x4x16xf32, #tpu.memory_space<vmem>>, %arg6: memref<2x1x272xf32, #tpu.memory_space<vmem>>) attributes {dimension_semantics = [#tpu.dimension_semantics<parallel>, #tpu.dimension_semantics<parallel>], iteration_bounds = array<i64: 2, 1>, scalar_prefetch = 0 : i64, scratch_operands = 1 : i64, tpu.core_type = #tpu.core_type<tc>, window_params = [{transform_indices = @transform_0, window_bounds = array<i64: 1, 4, 16>}, {transform_indices = @transform_1, window_bounds = array<i64: 2, 7>}, {transform_indices = @transform_2, window_bounds = array<i64: 1>}, {transform_indices = @transform_3, window_bounds = array<i64: 1, 4, 16>}]} {
    %c0 = arith.constant 0 : index
    %c0_0 = arith.constant 0 : index
    %c0_1 = arith.constant 0 : index
    %0 = vector.load %arg2[%c0, %c0_0, %c0_1] : memref<1x4x16xf32, #tpu.memory_space<vmem>>, vector<1x4x16xf32>
    %cst = arith.constant dense<0xFF800000> : vector<1x16xf32>
    %1 = vector.multi_reduction <maximumf>, %0, %cst [1] : vector<1x4x16xf32> to vector<1x16xf32>
    %cst_2 = arith.constant dense<0.000000e+00> : vector<1x16xf32>
    %2 = vector.multi_reduction <add>, %0, %cst_2 [1] : vector<1x4x16xf32> to vector<1x16xf32>
    %cst_3 = arith.constant 2.500000e-01 : f32
    %3 = vector.broadcast %cst_3 : f32 to vector<1x16xf32>
    %4 = arith.mulf %2, %3 : vector<1x16xf32>
    %cst_4 = arith.constant 0.000000e+00 : f32
    %5 = vector.broadcast %cst_4 : f32 to vector<1x128xf32>
    %c0_5 = arith.constant 0 : index
    %c0_6 = arith.constant 0 : index
    %c0_7 = arith.constant 0 : index
    %6 = vector.load %arg6[%c0_5, %c0_6, %c0_7] : memref<2x1x272xf32, #tpu.memory_space<vmem>>, vector<1x1x128xf32>
    %7 = vector.shape_cast %6 : vector<1x1x128xf32> to vector<1x128xf32>
    %8 = vector.shape_cast %5 : vector<1x128xf32> to vector<1x1x128xf32>
    tpu.vector_store %arg6[%c0_5, %c0_6, %c0_7], %8 {strides = array<i32>} : memref<2x1x272xf32, #tpu.memory_space<vmem>>, vector<1x1x128xf32>,
    %c1 = arith.constant 1 : index
    %c0_8 = arith.constant 0 : index
    %c0_9 = arith.constant 0 : index
    %9 = vector.load %arg6[%c1, %c0_8, %c0_9] : memref<2x1x272xf32, #tpu.memory_space<vmem>>, vector<1x1x128xf32>
    %10 = vector.shape_cast %9 : vector<1x1x128xf32> to vector<1x128xf32>
    %11 = vector.shape_cast %5 : vector<1x128xf32> to vector<1x1x128xf32>
    tpu.vector_store %arg6[%c1, %c0_8, %c0_9], %11 {strides = array<i32>} : memref<2x1x272xf32, #tpu.memory_space<vmem>>, vector<1x1x128xf32>,
    %c0_10 = arith.constant 0 : index
    %c0_11 = arith.constant 0 : index
    %c144 = arith.constant 144 : index
    %12 = vector.load %arg6[%c0_10, %c0_11, %c144] : memref<2x1x272xf32, #tpu.memory_space<vmem>>, vector<1x1x128xf32>
    %13 = vector.shape_cast %12 : vector<1x1x128xf32> to vector<1x128xf32>
    %14 = vector.shape_cast %5 : vector<1x128xf32> to vector<1x1x128xf32>
    tpu.vector_store %arg6[%c0_10, %c0_11, %c144], %14 {strides = array<i32>} : memref<2x1x272xf32, #tpu.memory_space<vmem>>, vector<1x1x128xf32>,
    %c1_12 = arith.constant 1 : index
    %c0_13 = arith.constant 0 : index
    %c144_14 = arith.constant 144 : index
    %15 = vector.load %arg6[%c1_12, %c0_13, %c144_14] : memref<2x1x272xf32, #tpu.memory_space<vmem>>, vector<1x1x128xf32>
    %16 = vector.shape_cast %15 : vector<1x1x128xf32> to vector<1x128xf32>
    %17 = vector.shape_cast %5 : vector<1x128xf32> to vector<1x1x128xf32>
    tpu.vector_store %arg6[%c1_12, %c0_13, %c144_14], %17 {strides = array<i32>} : memref<2x1x272xf32, #tpu.memory_space<vmem>>, vector<1x1x128xf32>,
    %c0_15 = arith.constant 0 : index
    %c0_16 = arith.constant 0 : index
    %c128 = arith.constant 128 : index
    %18 = vector.load %arg6[%c0_15, %c0_16, %c128] : memref<2x1x272xf32, #tpu.memory_space<vmem>>, vector<1x1x16xf32>
    %19 = vector.shape_cast %18 : vector<1x1x16xf32> to vector<1x16xf32>
    %20 = vector.shape_cast %1 : vector<1x16xf32> to vector<1x1x16xf32>
    tpu.vector_store %arg6[%c0_15, %c0_16, %c128], %20 {strides = array<i32>} : memref<2x1x272xf32, #tpu.memory_space<vmem>>, vector<1x1x16xf32>,
    %c1_17 = arith.constant 1 : index
    %c0_18 = arith.constant 0 : index
    %c128_19 = arith.constant 128 : index
    %21 = vector.load %arg6[%c1_17, %c0_18, %c128_19] : memref<2x1x272xf32, #tpu.memory_space<vmem>>, vector<1x1x16xf32>
    %22 = vector.shape_cast %21 : vector<1x1x16xf32> to vector<1x16xf32>
    %23 = vector.shape_cast %4 : vector<1x16xf32> to vector<1x1x16xf32>
    tpu.vector_store %arg6[%c1_17, %c0_18, %c128_19], %23 {strides = array<i32>} : memref<2x1x272xf32, #tpu.memory_space<vmem>>, vector<1x1x16xf32>,
    %c0_20 = arith.constant 0 : index
    %24 = memref.load %arg4[%c0_20] : memref<1xf32, #tpu.memory_space<smem>>
    %25 = vector.broadcast %24 : f32 to vector<1x16xf32>
    %c0_21 = arith.constant 0 : index
    %c0_22 = arith.constant 0 : index
    %26 = memref.load %arg3[%c0_21, %c0_22] : memref<2x7xf32, #tpu.memory_space<smem>>
    %c0_23 = arith.constant 0 : index
    %c0_24 = arith.constant 0 : index
    %c125 = arith.constant 125 : index
    %27 = vector.load %arg6[%c0_23, %c0_24, %c125] : memref<2x1x272xf32, #tpu.memory_space<vmem>>, vector<1x1x16xf32>
    %28 = vector.shape_cast %27 : vector<1x1x16xf32> to vector<1x16xf32>
    %29 = vector.broadcast %26 : f32 to vector<1x16xf32>
    %30 = arith.mulf %29, %28 : vector<1x16xf32>
    %c1_25 = arith.constant 1 : index
    %c0_26 = arith.constant 0 : index
    %31 = memref.load %arg3[%c1_25, %c0_26] : memref<2x7xf32, #tpu.memory_space<smem>>
    %c1_27 = arith.constant 1 : index
    %c0_28 = arith.constant 0 : index
    %c125_29 = arith.constant 125 : index
    %32 = vector.load %arg6[%c1_27, %c0_28, %c125_29] : memref<2x1x272xf32, #tpu.memory_space<vmem>>, vector<1x1x16xf32>
    %33 = vector.shape_cast %32 : vector<1x1x16xf32> to vector<1x16xf32>
    %34 = vector.broadcast %31 : f32 to vector<1x16xf32>
    %35 = arith.mulf %34, %33 : vector<1x16xf32>
    %36 = arith.addf %30, %35 : vector<1x16xf32>
    %37 = arith.addf %25, %36 : vector<1x16xf32>
    %c0_30 = arith.constant 0 : index
    %c1_31 = arith.constant 1 : index
    %38 = memref.load %arg3[%c0_30, %c1_31] : memref<2x7xf32, #tpu.memory_space<smem>>
    %c0_32 = arith.constant 0 : index
    %c0_33 = arith.constant 0 : index
    %c126 = arith.constant 126 : index
    %39 = vector.load %arg6[%c0_32, %c0_33, %c126] : memref<2x1x272xf32, #tpu.memory_space<vmem>>, vector<1x1x16xf32>
    %40 = vector.shape_cast %39 : vector<1x1x16xf32> to vector<1x16xf32>
    %41 = vector.broadcast %38 : f32 to vector<1x16xf32>
    %42 = arith.mulf %41, %40 : vector<1x16xf32>
    %c1_34 = arith.constant 1 : index
    %c1_35 = arith.constant 1 : index
    %43 = memref.load %arg3[%c1_34, %c1_35] : memref<2x7xf32, #tpu.memory_space<smem>>
    %c1_36 = arith.constant 1 : index
    %c0_37 = arith.constant 0 : index
    %c126_38 = arith.constant 126 : index
    %44 = vector.load %arg6[%c1_36, %c0_37, %c126_38] : memref<2x1x272xf32, #tpu.memory_space<vmem>>, vector<1x1x16xf32>
    %45 = vector.shape_cast %44 : vector<1x1x16xf32> to vector<1x16xf32>
    %46 = vector.broadcast %43 : f32 to vector<1x16xf32>
    %47 = arith.mulf %46, %45 : vector<1x16xf32>
    %48 = arith.addf %42, %47 : vector<1x16xf32>
    %49 = arith.addf %37, %48 : vector<1x16xf32>
    %c0_39 = arith.constant 0 : index
    %c2 = arith.constant 2 : index
    %50 = memref.load %arg3[%c0_39, %c2] : memref<2x7xf32, #tpu.memory_space<smem>>
    %c0_40 = arith.constant 0 : index
    %c0_41 = arith.constant 0 : index
    %c127 = arith.constant 127 : index
    %51 = vector.load %arg6[%c0_40, %c0_41, %c127] : memref<2x1x272xf32, #tpu.memory_space<vmem>>, vector<1x1x16xf32>
    %52 = vector.shape_cast %51 : vector<1x1x16xf32> to vector<1x16xf32>
    %53 = vector.broadcast %50 : f32 to vector<1x16xf32>
    %54 = arith.mulf %53, %52 : vector<1x16xf32>
    %c1_42 = arith.constant 1 : index
    %c2_43 = arith.constant 2 : index
    %55 = memref.load %arg3[%c1_42, %c2_43] : memref<2x7xf32, #tpu.memory_space<smem>>
    %c1_44 = arith.constant 1 : index
    %c0_45 = arith.constant 0 : index
    %c127_46 = arith.constant 127 : index
    %56 = vector.load %arg6[%c1_44, %c0_45, %c127_46] : memref<2x1x272xf32, #tpu.memory_space<vmem>>, vector<1x1x16xf32>
    %57 = vector.shape_cast %56 : vector<1x1x16xf32> to vector<1x16xf32>
    %58 = vector.broadcast %55 : f32 to vector<1x16xf32>
    %59 = arith.mulf %58, %57 : vector<1x16xf32>
    %60 = arith.addf %54, %59 : vector<1x16xf32>
    %61 = arith.addf %49, %60 : vector<1x16xf32>
    %c0_47 = arith.constant 0 : index
    %c3 = arith.constant 3 : index
    %62 = memref.load %arg3[%c0_47, %c3] : memref<2x7xf32, #tpu.memory_space<smem>>
    %c0_48 = arith.constant 0 : index
    %c0_49 = arith.constant 0 : index
    %c128_50 = arith.constant 128 : index
    %63 = vector.load %arg6[%c0_48, %c0_49, %c128_50] : memref<2x1x272xf32, #tpu.memory_space<vmem>>, vector<1x1x16xf32>
    %64 = vector.shape_cast %63 : vector<1x1x16xf32> to vector<1x16xf32>
    %65 = vector.broadcast %62 : f32 to vector<1x16xf32>
    %66 = arith.mulf %65, %64 : vector<1x16xf32>
    %c1_51 = arith.constant 1 : index
    %c3_52 = arith.constant 3 : index
    %67 = memref.load %arg3[%c1_51, %c3_52] : memref<2x7xf32, #tpu.memory_space<smem>>
    %c1_53 = arith.constant 1 : index
    %c0_54 = arith.constant 0 : index
    %c128_55 = arith.constant 128 : index
    %68 = vector.load %arg6[%c1_53, %c0_54, %c128_55] : memref<2x1x272xf32, #tpu.memory_space<vmem>>, vector<1x1x16xf32>
    %69 = vector.shape_cast %68 : vector<1x1x16xf32> to vector<1x16xf32>
    %70 = vector.broadcast %67 : f32 to vector<1x16xf32>
    %71 = arith.mulf %70, %69 : vector<1x16xf32>
    %72 = arith.addf %66, %71 : vector<1x16xf32>
    %73 = arith.addf %61, %72 : vector<1x16xf32>
    %c0_56 = arith.constant 0 : index
    %c4 = arith.constant 4 : index
    %74 = memref.load %arg3[%c0_56, %c4] : memref<2x7xf32, #tpu.memory_space<smem>>
    %c0_57 = arith.constant 0 : index
    %c0_58 = arith.constant 0 : index
    %c129 = arith.constant 129 : index
    %75 = vector.load %arg6[%c0_57, %c0_58, %c129] : memref<2x1x272xf32, #tpu.memory_space<vmem>>, vector<1x1x16xf32>
    %76 = vector.shape_cast %75 : vector<1x1x16xf32> to vector<1x16xf32>
    %77 = vector.broadcast %74 : f32 to vector<1x16xf32>
    %78 = arith.mulf %77, %76 : vector<1x16xf32>
    %c1_59 = arith.constant 1 : index
    %c4_60 = arith.constant 4 : index
    %79 = memref.load %arg3[%c1_59, %c4_60] : memref<2x7xf32, #tpu.memory_space<smem>>
    %c1_61 = arith.constant 1 : index
    %c0_62 = arith.constant 0 : index
    %c129_63 = arith.constant 129 : index
    %80 = vector.load %arg6[%c1_61, %c0_62, %c129_63] : memref<2x1x272xf32, #tpu.memory_space<vmem>>, vector<1x1x16xf32>
    %81 = vector.shape_cast %80 : vector<1x1x16xf32> to vector<1x16xf32>
    %82 = vector.broadcast %79 : f32 to vector<1x16xf32>
    %83 = arith.mulf %82, %81 : vector<1x16xf32>
    %84 = arith.addf %78, %83 : vector<1x16xf32>
    %85 = arith.addf %73, %84 : vector<1x16xf32>
    %c0_64 = arith.constant 0 : index
    %c5 = arith.constant 5 : index
    %86 = memref.load %arg3[%c0_64, %c5] : memref<2x7xf32, #tpu.memory_space<smem>>
    %c0_65 = arith.constant 0 : index
    %c0_66 = arith.constant 0 : index
    %c130 = arith.constant 130 : index
    %87 = vector.load %arg6[%c0_65, %c0_66, %c130] : memref<2x1x272xf32, #tpu.memory_space<vmem>>, vector<1x1x16xf32>
    %88 = vector.shape_cast %87 : vector<1x1x16xf32> to vector<1x16xf32>
    %89 = vector.broadcast %86 : f32 to vector<1x16xf32>
    %90 = arith.mulf %89, %88 : vector<1x16xf32>
    %c1_67 = arith.constant 1 : index
    %c5_68 = arith.constant 5 : index
    %91 = memref.load %arg3[%c1_67, %c5_68] : memref<2x7xf32, #tpu.memory_space<smem>>
    %c1_69 = arith.constant 1 : index
    %c0_70 = arith.constant 0 : index
    %c130_71 = arith.constant 130 : index
    %92 = vector.load %arg6[%c1_69, %c0_70, %c130_71] : memref<2x1x272xf32, #tpu.memory_space<vmem>>, vector<1x1x16xf32>
    %93 = vector.shape_cast %92 : vector<1x1x16xf32> to vector<1x16xf32>
    %94 = vector.broadcast %91 : f32 to vector<1x16xf32>
    %95 = arith.mulf %94, %93 : vector<1x16xf32>
    %96 = arith.addf %90, %95 : vector<1x16xf32>
    %97 = arith.addf %85, %96 : vector<1x16xf32>
    %c0_72 = arith.constant 0 : index
    %c6 = arith.constant 6 : index
    %98 = memref.load %arg3[%c0_72, %c6] : memref<2x7xf32, #tpu.memory_space<smem>>
    %c0_73 = arith.constant 0 : index
    %c0_74 = arith.constant 0 : index
    %c131 = arith.constant 131 : index
    %99 = vector.load %arg6[%c0_73, %c0_74, %c131] : memref<2x1x272xf32, #tpu.memory_space<vmem>>, vector<1x1x16xf32>
    %100 = vector.shape_cast %99 : vector<1x1x16xf32> to vector<1x16xf32>
    %101 = vector.broadcast %98 : f32 to vector<1x16xf32>
    %102 = arith.mulf %101, %100 : vector<1x16xf32>
    %c1_75 = arith.constant 1 : index
    %c6_76 = arith.constant 6 : index
    %103 = memref.load %arg3[%c1_75, %c6_76] : memref<2x7xf32, #tpu.memory_space<smem>>
    %c1_77 = arith.constant 1 : index
    %c0_78 = arith.constant 0 : index
    %c131_79 = arith.constant 131 : index
    %104 = vector.load %arg6[%c1_77, %c0_78, %c131_79] : memref<2x1x272xf32, #tpu.memory_space<vmem>>, vector<1x1x16xf32>
    %105 = vector.shape_cast %104 : vector<1x1x16xf32> to vector<1x16xf32>
    %106 = vector.broadcast %103 : f32 to vector<1x16xf32>
    %107 = arith.mulf %106, %105 : vector<1x16xf32>
    %108 = arith.addf %102, %107 : vector<1x16xf32>
    %109 = arith.addf %97, %108 : vector<1x16xf32>
    %110 = arith.negf %109 : vector<1x16xf32>
    %111 = math.exp %110 : vector<1x16xf32>
    %cst_80 = arith.constant 1.000000e+00 : f32
    %112 = vector.broadcast %cst_80 : f32 to vector<1x16xf32>
    %113 = arith.addf %112, %111 : vector<1x16xf32>
    %114 = arith.divf %112, %113 : vector<1x16xf32>
    %115 = vector.shape_cast %114 : vector<1x16xf32> to vector<1x1x16xf32>
    %116 = vector.broadcast %115 : vector<1x1x16xf32> to vector<1x4x16xf32>
    %117 = arith.mulf %0, %116 : vector<1x4x16xf32>
    %c0_81 = arith.constant 0 : index
    %c0_82 = arith.constant 0 : index
    %c0_83 = arith.constant 0 : index
    %118 = vector.load %arg5[%c0_81, %c0_82, %c0_83] : memref<1x4x16xf32, #tpu.memory_space<vmem>>, vector<1x4x16xf32>
    tpu.vector_store %arg5[%c0_81, %c0_82, %c0_83], %117 {strides = array<i32>} : memref<1x4x16xf32, #tpu.memory_space<vmem>>, vector<1x4x16xf32>,
    return
  }
  func.func @transform_0(%arg0: i32, %arg1: i32) -> (i32, i32, i32) {
    %c0_i32 = arith.constant 0 : i32
    %c0_i32_0 = arith.constant 0 : i32
    %c0_i32_1 = arith.constant 0 : i32
    return %arg0, %c0_i32, %c0_i32_0 : i32, i32, i32
  }
  func.func @transform_1(%arg0: i32, %arg1: i32) -> (i32, i32) {
    %c0_i32 = arith.constant 0 : i32
    %c0_i32_0 = arith.constant 0 : i32
    %c0_i32_1 = arith.constant 0 : i32
    return %c0_i32, %c0_i32_0 : i32, i32
  }
  func.func @transform_2(%arg0: i32, %arg1: i32) -> i32 {
    %c0_i32 = arith.constant 0 : i32
    %c0_i32_0 = arith.constant 0 : i32
    return %c0_i32 : i32
  }
  func.func @transform_3(%arg0: i32, %arg1: i32) -> (i32, i32, i32) {
    %c0_i32 = arith.constant 0 : i32
    %c0_i32_0 = arith.constant 0 : i32
    %c0_i32_1 = arith.constant 0 : i32
    return %arg0, %c0_i32, %c0_i32_0 : i32, i32, i32
  }
}

</mosaic_0001>

<llo_original>
// kernel: tpu_custom_call.1
$region0: #{tpu_custom_call.1}
  #allocation0 [shape = 'u32[]', space=smem, size = 0x4, offset = 0x4, fixed_abs, tag = 'smem constant byte address 0x4 - core index']
  #allocation1 [shape = 'u32[72,128]{1,0:T(1,128)}', space=vmem, size = 0x9000, scoped, tag = 'internal scratch']
  #allocation2 [shape = 'f32[2,1,272]{2,1,0:T(1,128)}', space=vmem, size = 0xc00, scoped, tag = 'scratch operand']
  #allocation3 [shape = 'f32[1]{0:T(128)S(6)}', space=smem, size = 0x200, scoped, tag = 'scoped memory for tpu_custom_call.1']
  %s0 = inlined_call_operand.hbm [shape: f32[2,4,16], index: 0, kind: input, shape index: {}]
  %s1 = inlined_call_operand.vmem [shape: f32[2,7], index: 1, kind: input, shape index: {}]
  %s2 = inlined_call_operand.<no memory space> [shape: f32[1], index: 2, kind: input, shape index: {}]
  %s3 = inlined_call_operand.hbm [shape: f32[2,4,16], index: 3, kind: output, shape index: {}]
  %s4 = sld [smem:[#allocation0]]
  $region53: #{tpu_custom_call.1} parent=0
    _
  %s6 = ssub.s32 1, %s4
  %s7 = scalar_select 0, %s6, %s4
  %8 = sst [smem:[#allocation3]] %s2
  $region1: #{tpu_custom_call.1} parent=0
    #allocation4 [shape = 'u8[4096]{0}', space=vmem, size = 0x1000, scoped, tag = 'input window, operand 0']
    #allocation5 [shape = 's32[2]{0}', space=sflag, size = 0x8, scoped, tag = 'scoped memory for tpu_custom_call.1']
    #allocation6 [shape = 's32[2]{0}', space=sflag, size = 0x8, scoped, tag = 'scoped memory for tpu_custom_call.1']
    #allocation7 [shape = 's32[2]{0}', space=sflag, size = 0x8, scoped, tag = 'scoped memory for tpu_custom_call.1']
    #allocation8 [shape = 'u8[1024]{0}', space=smem, size = 0x400, scoped, tag = 'input window, operand 1, single buffered']
    #allocation9 [shape = 'u8[4096]{0}', space=vmem, size = 0x1000, scoped, tag = 'output window, operand 0']
    %9 = vsyncpa [#allocation5], 0
    %s10 = scalar_lea.sflag [#allocation5], 1
    %11 = vsyncpa %s10, 0
    %12 = vsyncpa [#allocation7], 0
    %13 = vsyncpa [#allocation6], 0
    %s14 = scalar_lea.sflag [#allocation6], 1
    %15 = vsyncpa %s14, 0
    loop: start=0, step=1, limit=4
    $region2: #{tpu_custom_call.1} parent=1 // loop_pre_header
      _
    $region3: #{tpu_custom_call.1} parent=1 // loop_header
      %s17 = sphi 0, %s21
      %p18 = scmp.ge.s32.totalorder %s17, 4
      %s24 = sphi 0, %s36
      %s25 = sphi 0, %s32
      %s26 = sphi 0, %s24
      %s27 = sphi 0, %s25
      %s28 = sphi 0, %s26
      %s29 = sphi 0, %s27
      %s39 = sphi 0, %s41
      %s42 = sphi 0, %s39
      %s43 = sphi 0, %s42
      %s59 = sphi 0, %s43
      %s63 = sphi 0, %s63
      %s65 = sphi 0, %s63
      %s66 = sphi 0, %s65
      %s80 = sphi 0, %s66
      %s84 = sphi 0, %s84
      %s86 = sphi 0, %s84
      %s87 = sphi 0, %s86
      %s101 = sphi 0, %s87
      %s107 = sphi 0, %s109
      %s110 = sphi 0, %s107
      %s111 = sphi 0, %s110
      %s127 = sphi 0, %s111
    $region4: #{tpu_custom_call.1} parent=1 // loop_header_branch
      %20 = sbr.rel (%p18) target = $region8
    $region5: #{tpu_custom_call.1} parent=1 // loop_body
      %s22 = ssub.s32 %s17, 1
      %s23 = ssub.s32 %s17, 2
      %s30 = sadd.s32 1, %s25
      %p31 = scmp.ge.s32.totalorder %s30, 1
      %s32 = scalar_select %p31, 0, %s30
      %s33 = sadd.s32 1, %s24
      %s34 = scalar_select %p31, %s33, %s24
      %p35 = scmp.ge.s32.totalorder %s34, 2
      %s36 = scalar_select %p35, 0, %s34
      %s37 = ssub.s32 %s24, %s36
      %p38 = scmp.eq.s32.totalorder %s37, 0
      %s40 = sadd.s32 %s39, 1
      %s41 = scalar_select %p38, %s39, %s40
      %p44 = pneg %p38
      %p45 = scmp.eq.s32.totalorder %s17, 1
      %p46 = por %p44, %p45
      %p47 = scmp.ne.s32.totalorder %s39, %s42
      %p48 = scmp.eq.s32.totalorder %s17, 0
      %p49 = por %p47, %p48
      %p50 = scmp.ne.s32.totalorder %s39, %s42
      %p51 = scmp.eq.s32.totalorder %s22, 1
      %p52 = por %p50, %p51
      %p53 = scmp.ne.s32.totalorder %s42, %s43
      %p54 = scmp.eq.s32.totalorder %s22, 0
      %p55 = por %p53, %p54
      %p56 = scmp.ne.s32.totalorder %s42, %s43
      %p57 = scmp.eq.s32.totalorder %s23, 1
      %p58 = por %p56, %p57
      %p60 = scmp.ne.s32.totalorder %s43, %s59
      %p61 = scmp.eq.s32.totalorder %s23, 0
      %p62 = por %p60, %p61
      %s64 = sadd.s32 %s63, 1
      %p67 = scmp.eq.s32.totalorder %s17, 1
      %p68 = scmp.ne.s32.totalorder %s63, %s65
      %p69 = scmp.eq.s32.totalorder %s17, 0
      %p70 = por %p68, %p69
      %p71 = scmp.ne.s32.totalorder %s63, %s65
      %p72 = scmp.eq.s32.totalorder %s22, 1
      %p73 = por %p71, %p72
      %p74 = scmp.ne.s32.totalorder %s65, %s66
      %p75 = scmp.eq.s32.totalorder %s22, 0
      %p76 = por %p74, %p75
      %p77 = scmp.ne.s32.totalorder %s65, %s66
      %p78 = scmp.eq.s32.totalorder %s23, 1
      %p79 = por %p77, %p78
      %p81 = scmp.ne.s32.totalorder %s66, %s80
      %p82 = scmp.eq.s32.totalorder %s23, 0
      %p83 = por %p81, %p82
      %s85 = sadd.s32 %s84, 1
      %p88 = scmp.eq.s32.totalorder %s17, 1
      %p89 = scmp.ne.s32.totalorder %s84, %s86
      %p90 = scmp.eq.s32.totalorder %s17, 0
      %p91 = por %p89, %p90
      %p92 = scmp.ne.s32.totalorder %s84, %s86
      %p93 = scmp.eq.s32.totalorder %s22, 1
      %p94 = por %p92, %p93
      %p95 = scmp.ne.s32.totalorder %s86, %s87
      %p96 = scmp.eq.s32.totalorder %s22, 0
      %p97 = por %p95, %p96
      %p98 = scmp.ne.s32.totalorder %s86, %s87
      %p99 = scmp.eq.s32.totalorder %s23, 1
      %p100 = por %p98, %p99
      %p102 = scmp.ne.s32.totalorder %s87, %s101
      %p103 = scmp.eq.s32.totalorder %s23, 0
      %p104 = por %p102, %p103
      %s105 = ssub.s32 %s24, %s36
      %p106 = scmp.eq.s32.totalorder %s105, 0
      %s108 = sadd.s32 %s107, 1
      %s109 = scalar_select %p106, %s107, %s108
      %p112 = pneg %p106
      %p113 = scmp.eq.s32.totalorder %s17, 1
      %p114 = por %p112, %p113
      %p115 = scmp.ne.s32.totalorder %s107, %s110
      %p116 = scmp.eq.s32.totalorder %s17, 0
      %p117 = por %p115, %p116
      %p118 = scmp.ne.s32.totalorder %s107, %s110
      %p119 = scmp.eq.s32.totalorder %s22, 1
      %p120 = por %p118, %p119
      %p121 = scmp.ne.s32.totalorder %s110, %s111
      %p122 = scmp.eq.s32.totalorder %s22, 0
      %p123 = por %p121, %p122
      %p124 = scmp.ne.s32.totalorder %s110, %s111
      %p125 = scmp.eq.s32.totalorder %s23, 1
      %p126 = por %p124, %p125
      %p128 = scmp.ne.s32.totalorder %s111, %s127
      %p129 = scmp.eq.s32.totalorder %s23, 0
      %p130 = por %p128, %p129
      %p131 = scmp.le.s32.totalorder 1, %s17
      %p132 = scmp.lt.s32.totalorder %s17, 3
      %p133 = pnand %p131, %p132
      %p134 = pneg %p133
      // Predicated region
      $region9: #{tpu_custom_call.1} parent=5 // pred_check
        _
      $region10: #{tpu_custom_call.1} parent=5 // pred_check_branch
        %136 = sbr.rel (%p133) target = $region12
      $region11: #{tpu_custom_call.1} parent=5 // pred_region
        %s137 = ssub.s32 %s17, 1
        // Predicated region
        $region13: #{tpu_custom_call.1} parent=11 // pred_check
          %p138 = pneg %p76
        $region14: #{tpu_custom_call.1} parent=11 // pred_check_branch
          %140 = sbr.rel (%p138) target = $region16
        $region15: #{tpu_custom_call.1} parent=11 // pred_region
          %142 = vsyncadd [#allocation7], 0
          %s144 = sshll.u32 %s1, 4
          %s145 = int_to_ptr.vmem [resolvable:$true] %s144
          %147 = dma.vmem_to_smem %s145, 32, [#allocation8], [#allocation7]
        $region16: #{tpu_custom_call.1} parent=11 // pred_fallthru
          _
        // Predicated region
        $region17: #{tpu_custom_call.1} parent=11 // pred_check
          %p148 = pneg %p97
        $region18: #{tpu_custom_call.1} parent=11 // pred_check_branch
          %150 = sbr.rel (%p148) target = $region20
        $region19: #{tpu_custom_call.1} parent=11 // pred_region
          _
        $region20: #{tpu_custom_call.1} parent=11 // pred_fallthru
          _
      $region12: #{tpu_custom_call.1} parent=5 // pred_fallthru
        _
      %p151 = scmp.lt.s32.totalorder %s17, 2
      // Predicated region
      $region21: #{tpu_custom_call.1} parent=5 // pred_check
        %p152 = pneg %p151
      $region22: #{tpu_custom_call.1} parent=5 // pred_check_branch
        %154 = sbr.rel (%p152) target = $region24
      $region23: #{tpu_custom_call.1} parent=5 // pred_region
        // Predicated region
        $region25: #{tpu_custom_call.1} parent=23 // pred_check
          %p155 = pneg %p49
        $region26: #{tpu_custom_call.1} parent=23 // pred_check_branch
          %157 = sbr.rel (%p155) target = $region28
        $region27: #{tpu_custom_call.1} parent=23 // pred_region
          %s158 = sand.u32 %s39, 1
          %s159 = scalar_lea.sflag [#allocation5], %s158
          %s160 = sand.u32 %s39, 1
          %s161 = smul.addr %s160, 4
          %s162 = scalar_lea.vmem [#allocation4], %s161
          %164 = vsyncadd %s159, 0
          %s165 = smul.addr %s24, 4
          %s166 = scalar_lea.hbm %s0, %s165
          %s168 = sshll.u32 %s166, 4
          %s169 = int_to_ptr.hbm [resolvable:$true] %s168
          %s170 = sshll.u32 %s162, 4
          %s171 = int_to_ptr.vmem [resolvable:$true] %s170
          %173 = dma.hbm_to_vmem [thread:$0]  %s169, 64, %s171, %s159
        $region28: #{tpu_custom_call.1} parent=23 // pred_fallthru
          _
      $region24: #{tpu_custom_call.1} parent=5 // pred_fallthru
        _
      %p174 = scmp.le.s32.totalorder 1, %s17
      %p175 = scmp.lt.s32.totalorder %s17, 3
      %p176 = pnand %p174, %p175
      %p177 = pneg %p176
      // Predicated region
      $region29: #{tpu_custom_call.1} parent=5 // pred_check
        _
      $region30: #{tpu_custom_call.1} parent=5 // pred_check_branch
        %179 = sbr.rel (%p176) target = $region32
      $region31: #{tpu_custom_call.1} parent=5 // pred_region
        %s180 = ssub.s32 %s17, 1
        %s181 = sand.u32 %s42, 1
        %s182 = scalar_lea.sflag [#allocation5], %s181
        %s183 = sand.u32 %s42, 1
        %s184 = smul.addr %s183, 4
        %s185 = scalar_lea.vmem [#allocation4], %s184
        // Predicated region
        $region33: #{tpu_custom_call.1} parent=31 // pred_check
          %p186 = pneg %p55
        $region34: #{tpu_custom_call.1} parent=31 // pred_check_branch
          %188 = sbr.rel (%p186) target = $region36
        $region35: #{tpu_custom_call.1} parent=31 // pred_region
          %190 = dma.done %s182, 64
        $region36: #{tpu_custom_call.1} parent=31 // pred_fallthru
          _
        // Predicated region
        $region37: #{tpu_custom_call.1} parent=31 // pred_check
          %p191 = pneg %p76
        $region38: #{tpu_custom_call.1} parent=31 // pred_check_branch
          %193 = sbr.rel (%p191) target = $region40
        $region39: #{tpu_custom_call.1} parent=31 // pred_region
          %195 = dma.done [#allocation7], 32
        $region40: #{tpu_custom_call.1} parent=31 // pred_fallthru
          _
        %196 = sfence
        %s197 = sand.u32 %s42, 1
        %s198 = scalar_lea.sflag [#allocation5], %s197
        %s199 = sand.u32 %s42, 1
        %s200 = smul.addr %s199, 4
        %s201 = scalar_lea.vmem [#allocation4], %s200
        %p202 = pneg %p55
        %p203 = pneg %p52
        %p204 = pneg %p76
        %p205 = pneg %p73
        %p206 = pneg %p97
        %p207 = pneg %p94
        %p208 = pneg %p123
        %p209 = pneg %p120
        %s210 = sand.u32 %s110, 1
        %s211 = scalar_lea.sflag [#allocation6], %s210
        %s212 = sand.u32 %s110, 1
        %s213 = smul.addr %s212, 4
        %s214 = scalar_lea.vmem [#allocation9], %s213
        %v215 = vld [vmem:[%s185] sm:$0xf]
        %vm216 = vcmask 125952
        %v217 = vsel %vm216, %v215, -inf
        %v218 = vrot.slane %v217, 4
        %v219 = vmax.f32 %v217, %v218
        %v220 = vrot.slane %v219, 2
        %v221 = vmax.f32 %v219, %v220
        %v222 = vrot.slane %v221, 1
        %v223 = vmax.f32 %v221, %v222
        %v224 = vsel %vm216, %v215, 0.0
        %v225 = vrot.slane %v224, 4
        %v226 = vadd.f32 %v224, %v225
        %v227 = vrot.slane %v226, 2
        %v228 = vadd.f32 %v226, %v227
        %v229 = vrot.slane %v228, 1
        %v230 = vadd.f32 %v228, %v229
        %v231 = vmul.f32 %v230, 0.25
        %v232 = vlaneseq
        %vm233 = vcmp.ge.s32.totalorder %v232, 0
        %vm234 = vcmp.lt.s32.totalorder %v232, 128
        %vm235 = vmand %vm233, %vm234
        %236 = vst.msk [vmem:[#allocation2] sm:$0x1] %vm235, 0.0
        %s237 = scalar_lea.vmem [#allocation2], 3
        %238 = vst.msk [vmem:[%s237] sm:$0x1] %vm235, 0.0
        %vm239 = vcmp.ge.s32.totalorder %v232, 16
        %vm240 = vcmp.lt.s32.totalorder %v232, 144
        %vm241 = vmand %vm239, %vm240
        %242 = vst.msk [vmem:[#allocation2 + $0x1] sm:$0x3] %vm241, 0.0
        %243 = vst.msk [vmem:[%s237 + $0x1] sm:$0x3] %vm241, 0.0
        %vm244 = vcmp.lt.s32.totalorder %v232, 16
        %vm245 = vmand %vm233, %vm244
        %246 = vst.msk [vmem:[#allocation2 + $0x1] sm:$0x1] %vm245, %v223
        %247 = vst.msk [vmem:[%s237 + $0x1] sm:$0x1] %vm245, %v231
        %s248 = sld [smem:[#allocation3]]
        %v249 = vstv %s248
        %s250 = sld [smem:[#allocation8]]
        %v251 = vld [vmem:[#allocation2] sm:$0x3]
        %v252 = vstv %s250
        %v253 = vmul.f32 %v252, %v251
        %s254 = sld [smem:[#allocation8 + $0x80]]
        %v255 = vld [vmem:[%s237] sm:$0x3]
        %v256 = vstv %s254
        %v257 = vmul.f32 %v256, %v255
        %v258 = vadd.f32 %v253, %v257
        %v259 = vadd.f32 %v249, %v258
        %s260 = sld [smem:[#allocation8 + $0x1]]
        %v261 = vstv %s260
        %v262 = vmul.f32 %v261, %v251
        %s263 = sld [smem:[#allocation8 + $0x81]]
        %v264 = vstv %s263
        %v265 = vmul.f32 %v264, %v255
        %v266 = vadd.f32 %v262, %v265
        %268 = vrot.lane.b32.xlu0 %v266, 127
        %v269 = vpop.permute.xlu0 %268
        %v270 = vrot.slane %v269, 1
        %vm271 = vcmask 1039360
        %v272 = vsel %vm271, %v269, %v270
        %v274 = vadd.f32 %v259, %v272
        %s275 = sld [smem:[#allocation8 + $0x2]]
        %v276 = vstv %s275
        %v277 = vmul.f32 %v276, %v251
        %s278 = sld [smem:[#allocation8 + $0x82]]
        %v279 = vstv %s278
        %v280 = vmul.f32 %v279, %v255
        %v281 = vadd.f32 %v277, %v280
        %283 = vrot.lane.b32.xlu0 %v281, 126
        %v284 = vpop.permute.xlu0 %283
        %v285 = vrot.slane %v284, 1
        %vm286 = vcmask 1031168
        %v287 = vsel %vm286, %v284, %v285
        %v289 = vadd.f32 %v274, %v287
        %s290 = sld [smem:[#allocation8 + $0x3]]
        %v291 = vld [vmem:[#allocation2 + $0x1] sm:$0x1]
        %v292 = vstv %s290
        %v293 = vmul.f32 %v292, %v291
        %s294 = sld [smem:[#allocation8 + $0x83]]
        %v295 = vld [vmem:[%s237 + $0x1] sm:$0x1]
        %v296 = vstv %s294
        %v297 = vmul.f32 %v296, %v295
        %v298 = vadd.f32 %v293, %v297
        %300 = vrot.lane.b32.xlu0 %v298, 125
        %v301 = vpop.permute.xlu0 %300
        %v302 = vrot.slane %v301, 7
        %vm303 = vcmask 1022976
        %v304 = vsel %vm303, %v302, %v301
        %v306 = vadd.f32 %v289, %v304
        %s307 = sld [smem:[#allocation8 + $0x4]]
        %v308 = vstv %s307
        %v309 = vmul.f32 %v308, %v291
        %s310 = sld [smem:[#allocation8 + $0x84]]
        %v311 = vstv %s310
        %v312 = vmul.f32 %v311, %v295
        %v313 = vadd.f32 %v309, %v312
        %315 = vrot.lane.b32.xlu0 %v313, 124
        %v316 = vpop.permute.xlu0 %315
        %v317 = vrot.slane %v316, 7
        %vm318 = vcmask 1014784
        %v319 = vsel %vm318, %v317, %v316
        %v321 = vadd.f32 %v306, %v319
        %s322 = sld [smem:[#allocation8 + $0x5]]
        %v323 = vstv %s322
        %v324 = vmul.f32 %v323, %v291
        %s325 = sld [smem:[#allocation8 + $0x85]]
        %v326 = vstv %s325
        %v327 = vmul.f32 %v326, %v295
        %v328 = vadd.f32 %v324, %v327
        %330 = vrot.lane.b32.xlu0 %v328, 123
        %v331 = vpop.permute.xlu0 %330
        %v332 = vrot.slane %v331, 7
        %vm333 = vcmask 1006592
        %v334 = vsel %vm333, %v332, %v331
        %v336 = vadd.f32 %v321, %v334
        %s337 = sld [smem:[#allocation8 + $0x6]]
        %v338 = vstv %s337
        %v339 = vmul.f32 %v338, %v291
        %s340 = sld [smem:[#allocation8 + $0x86]]
        %v341 = vstv %s340
        %v342 = vmul.f32 %v341, %v295
        %v343 = vadd.f32 %v339, %v342
        %345 = vrot.lane.b32.xlu0 %v343, 122
        %v346 = vpop.permute.xlu0 %345
        %v347 = vrot.slane %v346, 7
        %vm348 = vcmask 998400
        %v349 = vsel %vm348, %v347, %v346
        %v351 = vadd.f32 %v336, %v349
        %v352 = vxor.u32 %v351, 2147483648
        %v353 = vmul.f32 %v352, 1.442695
        %v354 = vpow.pop %v353
        %v355 = vadd.f32 %v354, 1.0
        %v356 = vrcp.pop %v355
        %v357 = vmul.f32 %v355, %v356
        %v358 = vsub.f32 1.0, %v357
        %v359 = vmul.f32 %v356, %v358
        %v360 = vadd.f32 %v356, %v359
        %vm361 = vweird.f32 %v355
        %vm362 = vweird.f32 %v356
        %vm363 = vmor %vm361, %vm362
        %v364 = vsel %vm363, %v356, %v360
        %v365 = vand.u32 2147483647, %v355
        %vm366 = vcmp.eq.f32.partialorder %v365, 8.507059e+37
        %v367 = vand.u32 %v355, 2147483648
        %v368 = vor.u32 1.1754944e-38, %v367
        %v369 = vsel %vm366, %v368, %v364
        %v370 = vmul.f32 1.0, %v369
        %v372 = vperm.slane %v370, 0
        %v373 = vperm.slane %v370, 1
        %374 = vrot.lane.b32.xlu0 %v372, 3
        %v375 = vpop.permute.xlu0 %374
        %376 = vrot.lane.b32.xlu0 %v373, 3
        %v377 = vpop.permute.xlu0 %376
        %vm378 = vcmask 23552
        %v379 = vsel %vm378, %v375, %v377
        %v381 = vmul.f32 %v215, %v379
        %382 = vst.msk [vmem:[%s214] sm:$0xf] %vm216, %v381
        %s383 = sand.u32 %s110, 1
        %s384 = scalar_lea.sflag [#allocation6], %s383
        %s385 = sand.u32 %s110, 1
        %s386 = smul.addr %s385, 4
        %s387 = scalar_lea.vmem [#allocation9], %s386
        // Predicated region
        $region41: #{tpu_custom_call.1} parent=31 // pred_check
          %p388 = pneg %p120
        $region42: #{tpu_custom_call.1} parent=31 // pred_check_branch
          %390 = sbr.rel (%p388) target = $region44
        $region43: #{tpu_custom_call.1} parent=31 // pred_region
          %392 = vsyncadd %s384, 0
          %s393 = smul.addr %s26, 4
          %s394 = scalar_lea.hbm %s3, %s393
          %s396 = sshll.u32 %s387, 4
          %s397 = int_to_ptr.vmem [resolvable:$true] %s396
          %s398 = sshll.u32 %s394, 4
          %s399 = int_to_ptr.hbm [resolvable:$true] %s398
          %401 = dma.vmem_to_hbm [thread:$0]  %s397, 64, %s399, %s384
        $region44: #{tpu_custom_call.1} parent=31 // pred_fallthru
          _
      $region32: #{tpu_custom_call.1} parent=5 // pred_fallthru
        _
      %p402 = scmp.le.s32.totalorder 2, %s17
      // Predicated region
      $region45: #{tpu_custom_call.1} parent=5 // pred_check
        %p403 = pneg %p402
      $region46: #{tpu_custom_call.1} parent=5 // pred_check_branch
        %405 = sbr.rel (%p403) target = $region48
      $region47: #{tpu_custom_call.1} parent=5 // pred_region
        %s406 = ssub.s32 %s17, 2
        // Predicated region
        $region49: #{tpu_custom_call.1} parent=47 // pred_check
          %p407 = pneg %p126
        $region50: #{tpu_custom_call.1} parent=47 // pred_check_branch
          %409 = sbr.rel (%p407) target = $region52
        $region51: #{tpu_custom_call.1} parent=47 // pred_region
          %s410 = sand.u32 %s111, 1
          %s411 = scalar_lea.sflag [#allocation6], %s410
          %s412 = sand.u32 %s111, 1
          %s413 = smul.addr %s412, 4
          %s414 = scalar_lea.vmem [#allocation9], %s413
          %416 = dma.done %s411, 64
        $region52: #{tpu_custom_call.1} parent=47 // pred_fallthru
          _
      $region48: #{tpu_custom_call.1} parent=5 // pred_fallthru
        _
    $region6: #{tpu_custom_call.1} parent=1 // loop_footer
      %s21 = sadd.s32 1, %s17
    $region7: #{tpu_custom_call.1} parent=1 // loop_footer_branch
      %16 = sbr.rel target = $region3
    $region8: #{tpu_custom_call.1} parent=1 // loop_exit
      _
    %417 = vsyncpa [#allocation5], 1
    %s418 = scalar_lea.sflag [#allocation5], 1
    %419 = vsyncpa %s418, 1
    %420 = vsyncpa [#allocation6], 1
    %s421 = scalar_lea.sflag [#allocation6], 1
    %422 = vsyncpa %s421, 1
    %423 = vsyncpa [#allocation7], 1
    %s424 = scalar_lea.sflag [#allocation7], 1
    %425 = vsyncpa %s424, 1

</llo_original>
